<compile_context>
chip_gen: v5e
topology: v5e:2x2
jax: 0.10.0
libtpu: 0.0.40
codegen_flags: <defaults>
</compile_context>

<pallas_src>
import jax
import jax.numpy as jnp
from jax.experimental import pallas as pl
from jax.experimental.pallas import tpu as pltpu


# -----------------------------------------------------------------------------
# Fused per-run kernel
# -----------------------------------------------------------------------------
def _fused_net_kernel(scal_ref, glob_ref, w_in_ref, w_f_ref, w_out_ref,
                      cols_ref, init_ref, aty_ref, omsq_ref, out_ref, x_ref):
    i = pl.program_id(1)                       # reverse-time index: t = T - i

    aty = aty_ref[...]                         # (8, tile)  AT(y), dup 8 rows
    omsq = omsq_ref[...]                       # (8, tile)  1 - mask^2

    # ---- x = sqrt(ab_T) * cat([ATy, help*ATy], dim=1), only at i == 0 ------
    @pl.when(i == 0)
    def _():
        x_ref[...] = init_ref[...] * aty       # (8,1) row-scale * (8,tile)

    x = x_ref[...]                             # resident state

    # Per-timestep small weights, VMEM resident, dynamically indexed (no
    # per-step streaming DMA).
    w_in = w_in_ref[i]                         # (8, 8) conv_in
    w_f = w_f_ref[i]                           # (8, 8) duplicated f2i mix
    w_out = w_out_ref[i]                       # (8, 8) conv_out
    cols = cols_ref[i]                         # (8, 8) per-row constants
    b_in, b_out = cols[:, 0:1], cols[:, 1:2]
    bf = cols[:, 2:3]
    wiAB, wiB = cols[:, 3:4], cols[:, 4:5]
    wiC, bi = cols[:, 5:6], cols[:, 6:7]

    hi = jax.lax.Precision.HIGHEST

    # ---- stand-in truncated UNet: conv_in + SiLU, Injector, conv_out -------
    z = jnp.dot(w_in, x, precision=hi,
                preferred_element_type=jnp.float32) + b_in
    z = z * jax.nn.sigmoid(z)                                  # SiLU

    # Injector: u = f2i(pixel_shuffle(z)); computed duplicated onto both
    # channel halves via the (8,8) matrix w_f (MXU), so no sublane slicing.
    u = jnp.dot(w_f, z, precision=hi,
                preferred_element_type=jnp.float32) + bf
    # i2f(cat([u, AT(A(u)), ATy])) residual, with AT(A(.)) = msq = 1 - omsq:
    #   inj = (wiA + wiB*msq)*u + wiC*ATy + bi = (wiAB - wiB*omsq)*u + ...
    z = z + (wiAB - wiB * omsq) * u + wiC * aty + bi

    e = jnp.dot(w_out, z, precision=hi,
                preferred_element_type=jnp.float32) + b_out    # noise estimate

    # ---- Step.body elementwise math (precomputed scalars, no divides) ------
    rab = scal_ref[4 * i + 0]                  # 1 / sqrt(ab_t)
    s1m = scal_ref[4 * i + 1]                  # sqrt(1 - ab_t)
    sabp = scal_ref[4 * i + 2]                 # sqrt(ab_prev)
    s1mp = scal_ref[4 * i + 3]                 # sqrt(1 - ab_prev)

    x0 = (x - s1m * e) * rab
    x1 = omsq * x0 + aty                       # x0 - AT(A(x0) - y)
    x_new = sabp * x1 + s1mp * e
    x_ref[...] = x_new

    # ---- merged output x[:, :1] + merge_scale * x[:, 1:], last step only ---
    @pl.when(i == pl.num_programs(1) - 1)
    def _():
        out_ref[...] = x_new[0:4, :] + glob_ref[0] * x_new[4:8, :]


# -----------------------------------------------------------------------------
# Layout helpers (plain JAX, run once outside the T loop)
# -----------------------------------------------------------------------------
def _pixel_unshuffle(x, r):
    B, c, H, W = x.shape
    h, w = H // r, W // r
    x = x.reshape(B, c, h, r, w, r).transpose(0, 1, 3, 5, 2, 4)
    return x.reshape(B, c * r * r, h, w)


def _pixel_shuffle(x, r):
    B, C, h, w = x.shape
    c = C // (r * r)
    x = x.reshape(B, c, r, r, h, w).transpose(0, 1, 4, 2, 5, 3)
    return x.reshape(B, c, h * r, w * r)


def _to_patch_rows(x):
    """(B, C, H, W) -> (C*4, B*(H/2)*(W/2)) in the r=2 'patch' basis."""
    u = _pixel_unshuffle(x, 2)
    B, C4, h, w = u.shape
    return u.transpose(1, 0, 2, 3).reshape(C4, B * h * w)


def _from_patch_rows(u, B, H, W):
    """(C*4, B*h*w) -> (B, C, H, W)."""
    C4 = u.shape[0]
    h, w = H // 2, W // 2
    u = u.reshape(C4, B, h, w).transpose(1, 0, 2, 3)
    return _pixel_shuffle(u, 2)


def _pick_tile(n, budget_bytes=24 << 20, bytes_per_col=192):
    """Largest 128-multiple tile dividing n within a VMEM budget.

    Per pixel column: aty8/omsq8 double-buffered blocks (2*2*8*4 = 128 B),
    the double-buffered (4, tile) output block (32 B) and the (8, tile)
    resident state scratch (32 B) -> ~192 B.  When everything fits we still
    keep >= 2 tiles so the "parallel" pixel axis can shard across v7x's two
    TensorCores (negligible cost on single-core v5e/v6e).
    """
    cap = max(128, (budget_bytes // bytes_per_col) // 128 * 128)
    if n <= cap:
        half = n // 2
        if half >= 128 and half % 128 == 0:
            return half
        return n
    t = min(n, cap)
    t -= t % 128
    while n % t:
        t -= 128
    return t


# -----------------------------------------------------------------------------
# Forward pass (single fused pallas_call)
# -----------------------------------------------------------------------------
def net_forward(params, y, mask):
    """Net.forward: y (B,1,H,W) measurements, mask (1,1,H,W) = A = AT."""
    B, _, H, W = y.shape
    assert H % 2 == 0 and W % 2 == 0
    Nq = B * (H // 2) * (W // 2)
    assert Nq % 128 == 0, "B*(H/2)*(W/2) must be a multiple of 128"
    T = params["alpha"].shape[0]
    f32 = jnp.float32

    alpha_bar = jnp.concatenate(
        [jnp.ones((1,), f32), jnp.cumprod(params["alpha"].astype(f32))])
    ab_t = alpha_bar[1:][::-1]       # grid index i -> t = T - i
    ab_p = alpha_bar[:-1][::-1]

    # Flattened 1-D SMEM scalar table (avoids 2-D SMEM padding blow-up).
    scal = jnp.stack([1.0 / jnp.sqrt(ab_t), jnp.sqrt(1.0 - ab_t),
                      jnp.sqrt(ab_p), jnp.sqrt(1.0 - ab_p)],
                     axis=1).reshape(-1)                         # (4*T,)
    glob = params["merge_scale_factor"].astype(f32).reshape(1)   # (1,)

    # Per-timestep weights, stacked in reverse-time order (i -> t = T - i).
    eye4 = jnp.eye(4, dtype=f32)
    w_in_l, w_f_l, w_out_l, cols_l = [], [], [], []
    for i in range(T):
        p = params["unet"][T - 1 - i]
        w_in_l.append(p["w_in"].astype(f32))
        w_out_l.append(p["w_out"].astype(f32))
        wf = p["inj"]["w_f2i"].reshape(-1).astype(f32)           # (2,)
        blk = jnp.concatenate([wf[0] * eye4, wf[1] * eye4], axis=1)   # (4,8)
        w_f_l.append(jnp.concatenate([blk, blk], axis=0))        # (8,8)
        wi = p["inj"]["w_i2f"].astype(f32)                       # (2,3)
        bi = p["inj"]["b_i2f"].astype(f32)                       # (2,)
        bf = p["inj"]["b_f2i"].astype(f32)                       # (1,)
        rep = lambda v: jnp.repeat(v, 4)                         # (2,)->(8,)
        cols_l.append(jnp.stack([
            p["b_in"].astype(f32),                 # 0: conv_in bias
            p["b_out"].astype(f32),                # 1: conv_out bias
            jnp.broadcast_to(bf, (8,)),            # 2: f2i bias
            rep(wi[:, 0] + wi[:, 1]),              # 3: wiA + wiB
            rep(wi[:, 1]),                         # 4: wiB
            rep(wi[:, 2]),                         # 5: wiC (ATy coeff)
            rep(bi),                               # 6: i2f bias
            jnp.zeros((8,), f32),                  # 7: pad
        ], axis=1))                                # (8, 8)
    w_in_all = jnp.stack(w_in_l)                   # (T, 8, 8)
    w_f_all = jnp.stack(w_f_l)                     # (T, 8, 8)
    w_out_all = jnp.stack(w_out_l)                 # (T, 8, 8)
    cols_all = jnp.stack(cols_l)                   # (T, 8, 8)

    help_s = params["input_help_scale_factor"].astype(f32).reshape(())
    initcol = (jnp.sqrt(alpha_bar[-1])
               * jnp.concatenate([jnp.ones((4,), f32),
                                  jnp.broadcast_to(help_s, (4,))])
               ).reshape(8, 1)

    # Pixel-domain constants (patch basis, duplicated to both state channels),
    # computed once here instead of every timestep inside the kernel.
    mask4 = _to_patch_rows(jnp.broadcast_to(mask, (B, 1, H, W)).astype(f32))
    y4 = _to_patch_rows(y.astype(f32))
    aty8 = jnp.tile(mask4 * y4, (2, 1))                  # (8, Nq)  AT(y)
    omsq8 = jnp.tile(1.0 - mask4 * mask4, (2, 1))        # (8, Nq)  1 - mask^2

    tile = _pick_tile(Nq)
    grid = (Nq // tile, T)

    vmem = pltpu.MemorySpace.VMEM
    smem = pltpu.MemorySpace.SMEM

    out4 = pl.pallas_call(
        _fused_net_kernel,
        out_shape=jax.ShapeDtypeStruct((4, Nq), f32),
        grid=grid,
        in_specs=[
            pl.BlockSpec(memory_space=smem),                # scal   (4*T,)
            pl.BlockSpec(memory_space=smem),                # glob   (1,)
            pl.BlockSpec(memory_space=vmem),                # w_in   (T,8,8)
            pl.BlockSpec(memory_space=vmem),                # w_f    (T,8,8)
            pl.BlockSpec(memory_space=vmem),                # w_out  (T,8,8)
            pl.BlockSpec(memory_space=vmem),                # cols   (T,8,8)
            pl.BlockSpec(memory_space=vmem),                # init   (8,1)
            pl.BlockSpec((8, tile), lambda n, i: (0, n)),   # aty8
            pl.BlockSpec((8, tile), lambda n, i: (0, n)),   # omsq8
        ],
        out_specs=pl.BlockSpec((4, tile), lambda n, i: (0, n)),
        scratch_shapes=[pltpu.VMEM((8, tile), f32)],        # resident state
        compiler_params=pltpu.CompilerParams(
            dimension_semantics=("parallel", "arbitrary"),
            vmem_limit_bytes=32 * 1024 * 1024),
    )(scal, glob, w_in_all, w_f_all, w_out_all, cols_all, initcol, aty8, omsq8)

    return _from_patch_rows(out4, B, H, W)


# -----------------------------------------------------------------------------
# Pure-JAX reference (original NCHW formulation) for a correctness check
# -----------------------------------------------------------------------------
def _conv1x1_ref(x, w, b):
    # x: (B, Cin, H, W); w: (Cout, Cin); b: (Cout,)  -- exact f32 (no MXU).
    out = (w[None, :, :, None, None] * x[:, None, :, :, :]).sum(axis=2)
    return out + b[None, :, None, None]


def net_forward_ref(params, y, mask):
    T = params["alpha"].shape[0]
    f32 = jnp.float32
    alpha_bar = jnp.concatenate(
        [jnp.ones((1,), f32), jnp.cumprod(params["alpha"].astype(f32))])
    ATy = mask * y
    x = jnp.sqrt(alpha_bar[-1]) * jnp.concatenate(
        [ATy, params["input_help_scale_factor"] * ATy], axis=1)
    for i in range(T):
        t = T - i
        p = params["unet"][t - 1]
        ab_t, ab_p = alpha_bar[t], alpha_bar[t - 1]
        z = _pixel_unshuffle(x, 2)
        z = _conv1x1_ref(z, p["w_in"], p["b_in"])
        z = z * jax.nn.sigmoid(z)
        u = _conv1x1_ref(_pixel_shuffle(z, 2),
                         p["inj"]["w_f2i"], p["inj"]["b_f2i"])
        cat = jnp.concatenate([u, mask * (mask * u), ATy], axis=1)
        z = z + _pixel_unshuffle(
            _conv1x1_ref(cat, p["inj"]["w_i2f"], p["inj"]["b_i2f"]), 2)
        z = _conv1x1_ref(z, p["w_out"], p["b_out"])
        e = _pixel_shuffle(z, 2)
        x0 = (x - jnp.sqrt(1.0 - ab_t) * e) / jnp.sqrt(ab_t)
        x1 = x0 - mask * (mask * x0 - y)
        x = jnp.sqrt(ab_p) * x1 + jnp.sqrt(1.0 - ab_p) * e
    return x[:, :1] + params["merge_scale_factor"] * x[:, 1:]


# -----------------------------------------------------------------------------
# Deterministic parameter construction (stand-in for the external UNet weights)
# -----------------------------------------------------------------------------
def init_params(key, T):
    ks = jax.random.split(key, T * 4)
    unet_params = []
    for t in range(T):
        k = ks[t * 4:(t + 1) * 4]
        unet_params.append({
            # 1x1 conv weights stored torch-style as (Cout, Cin)
            "w_in": 0.1 * jax.random.normal(k[0], (8, 8), jnp.float32),
            "b_in": jnp.zeros((8,), jnp.float32),
            "w_out": 0.1 * jax.random.normal(k[1], (8, 8), jnp.float32),
            "b_out": jnp.zeros((8,), jnp.float32),
            "inj": {
                "w_f2i": 0.1 * jax.random.normal(k[2], (1, 2), jnp.float32),
                "b_f2i": jnp.zeros((1,), jnp.float32),
                "w_i2f": 0.1 * jax.random.normal(k[3], (2, 3), jnp.float32),
                "b_i2f": jnp.zeros((2,), jnp.float32),
            },
        })
    return {
        "alpha": jnp.full((T,), 0.5, jnp.float32),
        "input_help_scale_factor": jnp.ones((1,), jnp.float32),
        "merge_scale_factor": jnp.zeros((1,), jnp.float32),
        "unet": unet_params,
    }


if __name__ == "__main__":
    T, B, H, W = 3, 2, 16, 16
    key = jax.random.PRNGKey(0)
    k_y, k_p = jax.random.split(key)

    y = jax.random.normal(k_y, (B, 1, H, W), jnp.float32)
    # Deterministic degradation operator A = AT = elementwise mask multiply.
    ii = jax.lax.broadcasted_iota(jnp.int32, (1, 1, H, W), 2)
    jj = jax.lax.broadcasted_iota(jnp.int32, (1, 1, H, W), 3)
    mask = ((ii + jj) % 2).astype(jnp.float32) * 0.5 + 0.5

    params = init_params(k_p, T)

    out = jax.jit(net_forward)(params, y, mask)
    jax.block_until_ready(out)
    assert out.shape == (B, 1, H, W)

    ref = net_forward_ref(params, y, mask)
    err = float(jnp.max(jnp.abs(out - ref)))
    assert jnp.allclose(out, ref, rtol=1e-3, atol=1e-3), err
    print("KERNEL_OK")
</pallas_src>

<mosaic_0001>
module attributes {stable_mosaic.version = 11 : i64} {
  func.func @_fused_net_kernel(%arg0: i32, %arg1: i32, %arg2: memref<12xf32, #tpu.memory_space<smem>>, %arg3: memref<1xf32, #tpu.memory_space<smem>>, %arg4: memref<3x8x8xf32, #tpu.memory_space<vmem>>, %arg5: memref<3x8x8xf32, #tpu.memory_space<vmem>>, %arg6: memref<3x8x8xf32, #tpu.memory_space<vmem>>, %arg7: memref<3x8x8xf32, #tpu.memory_space<vmem>>, %arg8: memref<8x1xf32, #tpu.memory_space<vmem>>, %arg9: memref<8x128xf32, #tpu.memory_space<vmem>>, %arg10: memref<8x128xf32, #tpu.memory_space<vmem>>, %arg11: memref<4x128xf32, #tpu.memory_space<vmem>>, %arg12: memref<8x128xf32, #tpu.memory_space<vmem>>) attributes {dimension_semantics = [#tpu.dimension_semantics<parallel>, #tpu.dimension_semantics<arbitrary>], iteration_bounds = array<i64: 1, 3>, scalar_prefetch = 0 : i64, scratch_operands = 1 : i64, tpu.core_type = #tpu.core_type<tc>, window_params = [{transform_indices = @transform_0, window_bounds = array<i64: 12>}, {transform_indices = @transform_1, window_bounds = array<i64: 1>}, {pipeline_mode = #tpu.pipeline_mode<synchronous>, transform_indices = @transform_2, window_bounds = array<i64: 3, 8, 8>}, {pipeline_mode = #tpu.pipeline_mode<synchronous>, transform_indices = @transform_3, window_bounds = array<i64: 3, 8, 8>}, {pipeline_mode = #tpu.pipeline_mode<synchronous>, transform_indices = @transform_4, window_bounds = array<i64: 3, 8, 8>}, {pipeline_mode = #tpu.pipeline_mode<synchronous>, transform_indices = @transform_5, window_bounds = array<i64: 3, 8, 8>}, {pipeline_mode = #tpu.pipeline_mode<synchronous>, transform_indices = @transform_6, window_bounds = array<i64: 8, 1>}, {transform_indices = @transform_7, window_bounds = array<i64: 8, 128>}, {transform_indices = @transform_8, window_bounds = array<i64: 8, 128>}, {transform_indices = @transform_9, window_bounds = array<i64: 4, 128>}]} {
    %c0 = arith.constant 0 : index
    %c0_0 = arith.constant 0 : index
    %0 = vector.load %arg9[%c0, %c0_0] : memref<8x128xf32, #tpu.memory_space<vmem>>, vector<8x128xf32>
    %c0_1 = arith.constant 0 : index
    %c0_2 = arith.constant 0 : index
    %1 = vector.load %arg10[%c0_1, %c0_2] : memref<8x128xf32, #tpu.memory_space<vmem>>, vector<8x128xf32>
    %c0_i32 = arith.constant 0 : i32
    %2 = arith.cmpi eq, %arg1, %c0_i32 : i32
    %3 = arith.extui %2 : i1 to i32
    %c0_i32_3 = arith.constant 0 : i32
    %4 = arith.cmpi ne, %3, %c0_i32_3 : i32
    scf.if %4 {
      %c0_25 = arith.constant 0 : index
      %c0_26 = arith.constant 0 : index
      %83 = vector.load %arg8[%c0_25, %c0_26] : memref<8x1xf32, #tpu.memory_space<vmem>>, vector<8x1xf32>
      %84 = vector.broadcast %83 : vector<8x1xf32> to vector<8x128xf32>
      %85 = arith.mulf %84, %0 : vector<8x128xf32>
      %c0_27 = arith.constant 0 : index
      %c0_28 = arith.constant 0 : index
      %86 = vector.load %arg12[%c0_27, %c0_28] : memref<8x128xf32, #tpu.memory_space<vmem>>, vector<8x128xf32>
      tpu.vector_store %arg12[%c0_27, %c0_28], %85 {strides = array<i32>} : memref<8x128xf32, #tpu.memory_space<vmem>>, vector<8x128xf32>,
    } else {
    }
    %c0_4 = arith.constant 0 : index
    %c0_5 = arith.constant 0 : index
    %5 = vector.load %arg12[%c0_4, %c0_5] : memref<8x128xf32, #tpu.memory_space<vmem>>, vector<8x128xf32>
    %6 = arith.index_cast %arg1 : i32 to index
    %c0_6 = arith.constant 0 : index
    %c0_7 = arith.constant 0 : index
    %7 = vector.load %arg4[%6, %c0_6, %c0_7] : memref<3x8x8xf32, #tpu.memory_space<vmem>>, vector<1x8x8xf32>
    %8 = vector.shape_cast %7 : vector<1x8x8xf32> to vector<8x8xf32>
    %9 = arith.index_cast %arg1 : i32 to index
    %c0_8 = arith.constant 0 : index
    %c0_9 = arith.constant 0 : index
    %10 = vector.load %arg5[%9, %c0_8, %c0_9] : memref<3x8x8xf32, #tpu.memory_space<vmem>>, vector<1x8x8xf32>
    %11 = vector.shape_cast %10 : vector<1x8x8xf32> to vector<8x8xf32>
    %12 = arith.index_cast %arg1 : i32 to index
    %c0_10 = arith.constant 0 : index
    %c0_11 = arith.constant 0 : index
    %13 = vector.load %arg6[%12, %c0_10, %c0_11] : memref<3x8x8xf32, #tpu.memory_space<vmem>>, vector<1x8x8xf32>
    %14 = vector.shape_cast %13 : vector<1x8x8xf32> to vector<8x8xf32>
    %15 = arith.index_cast %arg1 : i32 to index
    %c0_12 = arith.constant 0 : index
    %c0_13 = arith.constant 0 : index
    %16 = vector.load %arg7[%15, %c0_12, %c0_13] : memref<3x8x8xf32, #tpu.memory_space<vmem>>, vector<1x8x8xf32>
    %17 = vector.shape_cast %16 : vector<1x8x8xf32> to vector<8x8xf32>
    %18 = vector.extract_strided_slice %17 {offsets = [0, 0], sizes = [8, 1], strides = [1, 1]} : vector<8x8xf32> to vector<8x1xf32>
    %19 = vector.extract_strided_slice %17 {offsets = [0, 1], sizes = [8, 1], strides = [1, 1]} : vector<8x8xf32> to vector<8x1xf32>
    %20 = vector.extract_strided_slice %17 {offsets = [0, 2], sizes = [8, 1], strides = [1, 1]} : vector<8x8xf32> to vector<8x1xf32>
    %21 = vector.extract_strided_slice %17 {offsets = [0, 3], sizes = [8, 1], strides = [1, 1]} : vector<8x8xf32> to vector<8x1xf32>
    %22 = vector.extract_strided_slice %17 {offsets = [0, 4], sizes = [8, 1], strides = [1, 1]} : vector<8x8xf32> to vector<8x1xf32>
    %23 = vector.extract_strided_slice %17 {offsets = [0, 5], sizes = [8, 1], strides = [1, 1]} : vector<8x8xf32> to vector<8x1xf32>
    %24 = vector.extract_strided_slice %17 {offsets = [0, 6], sizes = [8, 1], strides = [1, 1]} : vector<8x8xf32> to vector<8x1xf32>
    %cst = arith.constant dense<0.000000e+00> : vector<8x128xf32>
    %25 = tpu.matmul %8, %5, %cst {dimension_numbers = #tpu.dot_dimension_numbers<[1], [0], [0], [1], [0, 0, 1, 1], [], []>, precision = #tpu.contract_precision<fp32>} : vector<8x8xf32>, vector<8x128xf32>, vector<8x128xf32> -> vector<8x128xf32>
    %26 = vector.broadcast %18 : vector<8x1xf32> to vector<8x128xf32>
    %27 = arith.addf %25, %26 : vector<8x128xf32>
    %28 = arith.negf %27 : vector<8x128xf32>
    %29 = math.exp %28 : vector<8x128xf32>
    %cst_14 = arith.constant 1.000000e+00 : f32
    %30 = vector.broadcast %cst_14 : f32 to vector<8x128xf32>
    %31 = arith.addf %30, %29 : vector<8x128xf32>
    %32 = arith.divf %30, %31 : vector<8x128xf32>
    %33 = arith.mulf %27, %32 : vector<8x128xf32>
    %cst_15 = arith.constant dense<0.000000e+00> : vector<8x128xf32>
    %34 = tpu.matmul %11, %33, %cst_15 {dimension_numbers = #tpu.dot_dimension_numbers<[1], [0], [0], [1], [0, 0, 1, 1], [], []>, precision = #tpu.contract_precision<fp32>} : vector<8x8xf32>, vector<8x128xf32>, vector<8x128xf32> -> vector<8x128xf32>
    %35 = vector.broadcast %20 : vector<8x1xf32> to vector<8x128xf32>
    %36 = arith.addf %34, %35 : vector<8x128xf32>
    %37 = vector.broadcast %22 : vector<8x1xf32> to vector<8x128xf32>
    %38 = arith.mulf %37, %1 : vector<8x128xf32>
    %39 = vector.broadcast %21 : vector<8x1xf32> to vector<8x128xf32>
    %40 = arith.subf %39, %38 : vector<8x128xf32>
    %41 = arith.mulf %40, %36 : vector<8x128xf32>
    %42 = arith.addf %33, %41 : vector<8x128xf32>
    %43 = vector.broadcast %23 : vector<8x1xf32> to vector<8x128xf32>
    %44 = arith.mulf %43, %0 : vector<8x128xf32>
    %45 = arith.addf %42, %44 : vector<8x128xf32>
    %46 = vector.broadcast %24 : vector<8x1xf32> to vector<8x128xf32>
    %47 = arith.addf %45, %46 : vector<8x128xf32>
    %cst_16 = arith.constant dense<0.000000e+00> : vector<8x128xf32>
    %48 = tpu.matmul %14, %47, %cst_16 {dimension_numbers = #tpu.dot_dimension_numbers<[1], [0], [0], [1], [0, 0, 1, 1], [], []>, precision = #tpu.contract_precision<fp32>} : vector<8x8xf32>, vector<8x128xf32>, vector<8x128xf32> -> vector<8x128xf32>
    %49 = vector.broadcast %19 : vector<8x1xf32> to vector<8x128xf32>
    %50 = arith.addf %48, %49 : vector<8x128xf32>
    %c4_i32 = arith.constant 4 : i32
    %51 = arith.muli %c4_i32, %arg1 : i32
    %c0_i32_17 = arith.constant 0 : i32
    %52 = arith.addi %51, %c0_i32_17 : i32
    %53 = arith.index_cast %52 : i32 to index
    %54 = memref.load %arg2[%53] : memref<12xf32, #tpu.memory_space<smem>>
    %c4_i32_18 = arith.constant 4 : i32
    %55 = arith.muli %c4_i32_18, %arg1 : i32
    %c1_i32 = arith.constant 1 : i32
    %56 = arith.addi %55, %c1_i32 : i32
    %57 = arith.index_cast %56 : i32 to index
    %58 = memref.load %arg2[%57] : memref<12xf32, #tpu.memory_space<smem>>
    %c4_i32_19 = arith.constant 4 : i32
    %59 = arith.muli %c4_i32_19, %arg1 : i32
    %c2_i32 = arith.constant 2 : i32
    %60 = arith.addi %59, %c2_i32 : i32
    %61 = arith.index_cast %60 : i32 to index
    %62 = memref.load %arg2[%61] : memref<12xf32, #tpu.memory_space<smem>>
    %c4_i32_20 = arith.constant 4 : i32
    %63 = arith.muli %c4_i32_20, %arg1 : i32
    %c3_i32 = arith.constant 3 : i32
    %64 = arith.addi %63, %c3_i32 : i32
    %65 = arith.index_cast %64 : i32 to index
    %66 = memref.load %arg2[%65] : memref<12xf32, #tpu.memory_space<smem>>
    %67 = vector.broadcast %58 : f32 to vector<8x128xf32>
    %68 = arith.mulf %67, %50 : vector<8x128xf32>
    %69 = arith.subf %5, %68 : vector<8x128xf32>
    %70 = vector.broadcast %54 : f32 to vector<8x128xf32>
    %71 = arith.mulf %69, %70 : vector<8x128xf32>
    %72 = arith.mulf %1, %71 : vector<8x128xf32>
    %73 = arith.addf %72, %0 : vector<8x128xf32>
    %74 = vector.broadcast %62 : f32 to vector<8x128xf32>
    %75 = arith.mulf %74, %73 : vector<8x128xf32>
    %76 = vector.broadcast %66 : f32 to vector<8x128xf32>
    %77 = arith.mulf %76, %50 : vector<8x128xf32>
    %78 = arith.addf %75, %77 : vector<8x128xf32>
    %c0_21 = arith.constant 0 : index
    %c0_22 = arith.constant 0 : index
    %79 = vector.load %arg12[%c0_21, %c0_22] : memref<8x128xf32, #tpu.memory_space<vmem>>, vector<8x128xf32>
    tpu.vector_store %arg12[%c0_21, %c0_22], %78 {strides = array<i32>} : memref<8x128xf32, #tpu.memory_space<vmem>>, vector<8x128xf32>,
    %c2_i32_23 = arith.constant 2 : i32
    %80 = arith.cmpi eq, %arg1, %c2_i32_23 : i32
    %81 = arith.extui %80 : i1 to i32
    %c0_i32_24 = arith.constant 0 : i32
    %82 = arith.cmpi ne, %81, %c0_i32_24 : i32
    scf.if %82 {
      %83 = vector.extract_strided_slice %78 {offsets = [0, 0], sizes = [4, 128], strides = [1, 1]} : vector<8x128xf32> to vector<4x128xf32>
      %c0_25 = arith.constant 0 : index
      %84 = memref.load %arg3[%c0_25] : memref<1xf32, #tpu.memory_space<smem>>
      %85 = vector.extract_strided_slice %78 {offsets = [4, 0], sizes = [4, 128], strides = [1, 1]} : vector<8x128xf32> to vector<4x128xf32>
      %86 = vector.broadcast %84 : f32 to vector<4x128xf32>
      %87 = arith.mulf %86, %85 : vector<4x128xf32>
      %88 = arith.addf %83, %87 : vector<4x128xf32>
      %c0_26 = arith.constant 0 : index
      %c0_27 = arith.constant 0 : index
      %89 = vector.load %arg11[%c0_26, %c0_27] : memref<4x128xf32, #tpu.memory_space<vmem>>, vector<4x128xf32>
      tpu.vector_store %arg11[%c0_26, %c0_27], %88 {strides = array<i32>} : memref<4x128xf32, #tpu.memory_space<vmem>>, vector<4x128xf32>,
    } else {
    }
    return
  }
  func.func @transform_0(%arg0: i32, %arg1: i32) -> i32 {
    %c0_i32 = arith.constant 0 : i32
    %c0_i32_0 = arith.constant 0 : i32
    return %c0_i32 : i32
  }
  func.func @transform_1(%arg0: i32, %arg1: i32) -> i32 {
    %c0_i32 = arith.constant 0 : i32
    %c0_i32_0 = arith.constant 0 : i32
    return %c0_i32 : i32
  }
  func.func @transform_2(%arg0: i32, %arg1: i32) -> (i32, i32, i32) {
    %c0_i32 = arith.constant 0 : i32
    %c0_i32_0 = arith.constant 0 : i32
    %c0_i32_1 = arith.constant 0 : i32
    %c0_i32_2 = arith.constant 0 : i32
    return %c0_i32, %c0_i32_0, %c0_i32_1 : i32, i32, i32
  }
  func.func @transform_3(%arg0: i32, %arg1: i32) -> (i32, i32, i32) {
    %c0_i32 = arith.constant 0 : i32
    %c0_i32_0 = arith.constant 0 : i32
    %c0_i32_1 = arith.constant 0 : i32
    %c0_i32_2 = arith.constant 0 : i32
    return %c0_i32, %c0_i32_0, %c0_i32_1 : i32, i32, i32
  }
  func.func @transform_4(%arg0: i32, %arg1: i32) -> (i32, i32, i32) {
    %c0_i32 = arith.constant 0 : i32
    %c0_i32_0 = arith.constant 0 : i32
    %c0_i32_1 = arith.constant 0 : i32
    %c0_i32_2 = arith.constant 0 : i32
    return %c0_i32, %c0_i32_0, %c0_i32_1 : i32, i32, i32
  }
  func.func @transform_5(%arg0: i32, %arg1: i32) -> (i32, i32, i32) {
    %c0_i32 = arith.constant 0 : i32
    %c0_i32_0 = arith.constant 0 : i32
    %c0_i32_1 = arith.constant 0 : i32
    %c0_i32_2 = arith.constant 0 : i32
    return %c0_i32, %c0_i32_0, %c0_i32_1 : i32, i32, i32
  }
  func.func @transform_6(%arg0: i32, %arg1: i32) -> (i32, i32) {
    %c0_i32 = arith.constant 0 : i32
    %c0_i32_0 = arith.constant 0 : i32
    %c0_i32_1 = arith.constant 0 : i32
    return %c0_i32, %c0_i32_0 : i32, i32
  }
  func.func @transform_7(%arg0: i32, %arg1: i32) -> (i32, i32) {
    %c0_i32 = arith.constant 0 : i32
    %c0_i32_0 = arith.constant 0 : i32
    return %c0_i32, %arg0 : i32, i32
  }
  func.func @transform_8(%arg0: i32, %arg1: i32) -> (i32, i32) {
    %c0_i32 = arith.constant 0 : i32
    %c0_i32_0 = arith.constant 0 : i32
    return %c0_i32, %arg0 : i32, i32
  }
  func.func @transform_9(%arg0: i32, %arg1: i32) -> (i32, i32) {
    %c0_i32 = arith.constant 0 : i32
    %c0_i32_0 = arith.constant 0 : i32
    return %c0_i32, %arg0 : i32, i32
  }
}

</mosaic_0001>

<llo_original>
// kernel: net_forward.1
$region0: #{net_forward.1}
  #allocation0 [shape = 'u32[]', space=smem, size = 0x4, offset = 0x4, fixed_abs, tag = 'smem constant byte address 0x4 - core index']
  #allocation1 [shape = 'u32[72,128]{1,0:T(1,128)}', space=vmem, size = 0x9000, scoped, tag = 'internal scratch']
  #allocation2 [shape = 'f32[8,128]{1,0:T(8,128)}', space=vmem, size = 0x1000, scoped, tag = 'scratch operand']
  #allocation3 [shape = 'f32[1]{0:T(128)S(6)}', space=smem, size = 0x200, scoped, tag = 'scoped memory for net_forward.1']
  %s0 = inlined_call_operand.vmem [shape: f32[12], index: 0, kind: input, shape index: {}]
  %s1 = inlined_call_operand.<no memory space> [shape: f32[1], index: 1, kind: input, shape index: {}]
  %s2 = inlined_call_operand.vmem [shape: f32[3,8,8], index: 2, kind: input, shape index: {}]
  %s3 = inlined_call_operand.vmem [shape: f32[3,8,8], index: 3, kind: input, shape index: {}]
  %s4 = inlined_call_operand.vmem [shape: f32[3,8,8], index: 4, kind: input, shape index: {}]
  %s5 = inlined_call_operand.vmem [shape: f32[3,8,8], index: 5, kind: input, shape index: {}]
  %s6 = inlined_call_operand.vmem [shape: f32[8,1], index: 6, kind: input, shape index: {}]
  %s7 = inlined_call_operand.vmem [shape: f32[8,128], index: 7, kind: input, shape index: {}]
  %s8 = inlined_call_operand.vmem [shape: f32[8,128], index: 8, kind: input, shape index: {}]
  %s9 = inlined_call_operand.vmem [shape: f32[4,128], index: 9, kind: output, shape index: {}]
  %s10 = sld [smem:[#allocation0]]
  $region81: #{net_forward.1} parent=0
    _
  %s12 = ssub.s32 1, %s10
  %s13 = scalar_select 0, %s12, %s10
  %14 = sst [smem:[#allocation3]] %s1
  $region1: #{net_forward.1} parent=0
    #allocation4 [shape = 'u8[512]{0}', space=smem, size = 0x200, scoped, tag = 'input window, operand 0, single buffered']
    #allocation5 [shape = 's32[2]{0}', space=sflag, size = 0x8, scoped, tag = 'scoped memory for net_forward.1']
    %15 = vsyncpa [#allocation5], 0
    loop: start=0, step=1, limit=5
    $region2: #{net_forward.1} parent=1 // loop_pre_header
      _
    $region3: #{net_forward.1} parent=1 // loop_header
      %s17 = sphi 0, %s21
      %p18 = scmp.ge.s32.totalorder %s17, 5
      %s24 = sphi 0, %s36
      %s25 = sphi 0, %s32
      %s26 = sphi 0, %s24
      %s27 = sphi 0, %s25
      %s28 = sphi 0, %s26
      %s29 = sphi 0, %s27
      %s37 = sphi 0, %s37
      %s39 = sphi 0, %s37
      %s40 = sphi 0, %s39
      %s54 = sphi 0, %s40
      %s58 = sphi 0, %s58
      %s60 = sphi 0, %s58
      %s61 = sphi 0, %s60
      %s75 = sphi 0, %s61
      %s79 = sphi 0, %s79
      %s81 = sphi 0, %s79
      %s82 = sphi 0, %s81
      %s96 = sphi 0, %s82
      %s100 = sphi 0, %s100
      %s102 = sphi 0, %s100
      %s103 = sphi 0, %s102
      %s117 = sphi 0, %s103
      %s121 = sphi 0, %s121
      %s123 = sphi 0, %s121
      %s124 = sphi 0, %s123
      %s138 = sphi 0, %s124
      %s142 = sphi 0, %s142
      %s144 = sphi 0, %s142
      %s145 = sphi 0, %s144
      %s159 = sphi 0, %s145
      %s163 = sphi 0, %s163
      %s165 = sphi 0, %s163
      %s166 = sphi 0, %s165
      %s180 = sphi 0, %s166
      %s186 = sphi 0, %s188
      %s189 = sphi 0, %s186
      %s190 = sphi 0, %s189
      %s206 = sphi 0, %s190
      %s212 = sphi 0, %s214
      %s215 = sphi 0, %s212
      %s216 = sphi 0, %s215
      %s232 = sphi 0, %s216
      %s238 = sphi 0, %s240
      %s241 = sphi 0, %s238
      %s242 = sphi 0, %s241
      %s258 = sphi 0, %s242
    $region4: #{net_forward.1} parent=1 // loop_header_branch
      %20 = sbr.rel (%p18) target = $region8
    $region5: #{net_forward.1} parent=1 // loop_body
      %s22 = ssub.s32 %s17, 1
      %s23 = ssub.s32 %s17, 2
      %s30 = sadd.s32 1, %s25
      %p31 = scmp.ge.s32.totalorder %s30, 3
      %s32 = scalar_select %p31, 0, %s30
      %s33 = sadd.s32 1, %s24
      %s34 = scalar_select %p31, %s33, %s24
      %p35 = scmp.ge.s32.totalorder %s34, 1
      %s36 = scalar_select %p35, 0, %s34
      %s38 = sadd.s32 %s37, 1
      %p41 = scmp.eq.s32.totalorder %s17, 2
      %p42 = scmp.ne.s32.totalorder %s37, %s39
      %p43 = scmp.eq.s32.totalorder %s17, 0
      %p44 = por %p42, %p43
      %p45 = scmp.ne.s32.totalorder %s37, %s39
      %p46 = scmp.eq.s32.totalorder %s22, 2
      %p47 = por %p45, %p46
      %p48 = scmp.ne.s32.totalorder %s39, %s40
      %p49 = scmp.eq.s32.totalorder %s22, 0
      %p50 = por %p48, %p49
      %p51 = scmp.ne.s32.totalorder %s39, %s40
      %p52 = scmp.eq.s32.totalorder %s23, 2
      %p53 = por %p51, %p52
      %p55 = scmp.ne.s32.totalorder %s40, %s54
      %p56 = scmp.eq.s32.totalorder %s23, 0
      %p57 = por %p55, %p56
      %s59 = sadd.s32 %s58, 1
      %p62 = scmp.eq.s32.totalorder %s17, 2
      %p63 = scmp.ne.s32.totalorder %s58, %s60
      %p64 = scmp.eq.s32.totalorder %s17, 0
      %p65 = por %p63, %p64
      %p66 = scmp.ne.s32.totalorder %s58, %s60
      %p67 = scmp.eq.s32.totalorder %s22, 2
      %p68 = por %p66, %p67
      %p69 = scmp.ne.s32.totalorder %s60, %s61
      %p70 = scmp.eq.s32.totalorder %s22, 0
      %p71 = por %p69, %p70
      %p72 = scmp.ne.s32.totalorder %s60, %s61
      %p73 = scmp.eq.s32.totalorder %s23, 2
      %p74 = por %p72, %p73
      %p76 = scmp.ne.s32.totalorder %s61, %s75
      %p77 = scmp.eq.s32.totalorder %s23, 0
      %p78 = por %p76, %p77
      %s80 = sadd.s32 %s79, 1
      %p83 = scmp.eq.s32.totalorder %s17, 2
      %p84 = scmp.ne.s32.totalorder %s79, %s81
      %p85 = scmp.eq.s32.totalorder %s17, 0
      %p86 = por %p84, %p85
      %p87 = scmp.ne.s32.totalorder %s79, %s81
      %p88 = scmp.eq.s32.totalorder %s22, 2
      %p89 = por %p87, %p88
      %p90 = scmp.ne.s32.totalorder %s81, %s82
      %p91 = scmp.eq.s32.totalorder %s22, 0
      %p92 = por %p90, %p91
      %p93 = scmp.ne.s32.totalorder %s81, %s82
      %p94 = scmp.eq.s32.totalorder %s23, 2
      %p95 = por %p93, %p94
      %p97 = scmp.ne.s32.totalorder %s82, %s96
      %p98 = scmp.eq.s32.totalorder %s23, 0
      %p99 = por %p97, %p98
      %s101 = sadd.s32 %s100, 1
      %p104 = scmp.eq.s32.totalorder %s17, 2
      %p105 = scmp.ne.s32.totalorder %s100, %s102
      %p106 = scmp.eq.s32.totalorder %s17, 0
      %p107 = por %p105, %p106
      %p108 = scmp.ne.s32.totalorder %s100, %s102
      %p109 = scmp.eq.s32.totalorder %s22, 2
      %p110 = por %p108, %p109
      %p111 = scmp.ne.s32.totalorder %s102, %s103
      %p112 = scmp.eq.s32.totalorder %s22, 0
      %p113 = por %p111, %p112
      %p114 = scmp.ne.s32.totalorder %s102, %s103
      %p115 = scmp.eq.s32.totalorder %s23, 2
      %p116 = por %p114, %p115
      %p118 = scmp.ne.s32.totalorder %s103, %s117
      %p119 = scmp.eq.s32.totalorder %s23, 0
      %p120 = por %p118, %p119
      %s122 = sadd.s32 %s121, 1
      %p125 = scmp.eq.s32.totalorder %s17, 2
      %p126 = scmp.ne.s32.totalorder %s121, %s123
      %p127 = scmp.eq.s32.totalorder %s17, 0
      %p128 = por %p126, %p127
      %p129 = scmp.ne.s32.totalorder %s121, %s123
      %p130 = scmp.eq.s32.totalorder %s22, 2
      %p131 = por %p129, %p130
      %p132 = scmp.ne.s32.totalorder %s123, %s124
      %p133 = scmp.eq.s32.totalorder %s22, 0
      %p134 = por %p132, %p133
      %p135 = scmp.ne.s32.totalorder %s123, %s124
      %p136 = scmp.eq.s32.totalorder %s23, 2
      %p137 = por %p135, %p136
      %p139 = scmp.ne.s32.totalorder %s124, %s138
      %p140 = scmp.eq.s32.totalorder %s23, 0
      %p141 = por %p139, %p140
      %s143 = sadd.s32 %s142, 1
      %p146 = scmp.eq.s32.totalorder %s17, 2
      %p147 = scmp.ne.s32.totalorder %s142, %s144
      %p148 = scmp.eq.s32.totalorder %s17, 0
      %p149 = por %p147, %p148
      %p150 = scmp.ne.s32.totalorder %s142, %s144
      %p151 = scmp.eq.s32.totalorder %s22, 2
      %p152 = por %p150, %p151
      %p153 = scmp.ne.s32.totalorder %s144, %s145
      %p154 = scmp.eq.s32.totalorder %s22, 0
      %p155 = por %p153, %p154
      %p156 = scmp.ne.s32.totalorder %s144, %s145
      %p157 = scmp.eq.s32.totalorder %s23, 2
      %p158 = por %p156, %p157
      %p160 = scmp.ne.s32.totalorder %s145, %s159
      %p161 = scmp.eq.s32.totalorder %s23, 0
      %p162 = por %p160, %p161
      %s164 = sadd.s32 %s163, 1
      %p167 = scmp.eq.s32.totalorder %s17, 2
      %p168 = scmp.ne.s32.totalorder %s163, %s165
      %p169 = scmp.eq.s32.totalorder %s17, 0
      %p170 = por %p168, %p169
      %p171 = scmp.ne.s32.totalorder %s163, %s165
      %p172 = scmp.eq.s32.totalorder %s22, 2
      %p173 = por %p171, %p172
      %p174 = scmp.ne.s32.totalorder %s165, %s166
      %p175 = scmp.eq.s32.totalorder %s22, 0
      %p176 = por %p174, %p175
      %p177 = scmp.ne.s32.totalorder %s165, %s166
      %p178 = scmp.eq.s32.totalorder %s23, 2
      %p179 = por %p177, %p178
      %p181 = scmp.ne.s32.totalorder %s166, %s180
      %p182 = scmp.eq.s32.totalorder %s23, 0
      %p183 = por %p181, %p182
      %s184 = ssub.s32 %s24, %s36
      %p185 = scmp.eq.s32.totalorder %s184, 0
      %s187 = sadd.s32 %s186, 1
      %s188 = scalar_select %p185, %s186, %s187
      %p191 = pneg %p185
      %p192 = scmp.eq.s32.totalorder %s17, 2
      %p193 = por %p191, %p192
      %p194 = scmp.ne.s32.totalorder %s186, %s189
      %p195 = scmp.eq.s32.totalorder %s17, 0
      %p196 = por %p194, %p195
      %p197 = scmp.ne.s32.totalorder %s186, %s189
      %p198 = scmp.eq.s32.totalorder %s22, 2
      %p199 = por %p197, %p198
      %p200 = scmp.ne.s32.totalorder %s189, %s190
      %p201 = scmp.eq.s32.totalorder %s22, 0
      %p202 = por %p200, %p201
      %p203 = scmp.ne.s32.totalorder %s189, %s190
      %p204 = scmp.eq.s32.totalorder %s23, 2
      %p205 = por %p203, %p204
      %p207 = scmp.ne.s32.totalorder %s190, %s206
      %p208 = scmp.eq.s32.totalorder %s23, 0
      %p209 = por %p207, %p208
      %s210 = ssub.s32 %s24, %s36
      %p211 = scmp.eq.s32.totalorder %s210, 0
      %s213 = sadd.s32 %s212, 1
      %s214 = scalar_select %p211, %s212, %s213
      %p217 = pneg %p211
      %p218 = scmp.eq.s32.totalorder %s17, 2
      %p219 = por %p217, %p218
      %p220 = scmp.ne.s32.totalorder %s212, %s215
      %p221 = scmp.eq.s32.totalorder %s17, 0
      %p222 = por %p220, %p221
      %p223 = scmp.ne.s32.totalorder %s212, %s215
      %p224 = scmp.eq.s32.totalorder %s22, 2
      %p225 = por %p223, %p224
      %p226 = scmp.ne.s32.totalorder %s215, %s216
      %p227 = scmp.eq.s32.totalorder %s22, 0
      %p228 = por %p226, %p227
      %p229 = scmp.ne.s32.totalorder %s215, %s216
      %p230 = scmp.eq.s32.totalorder %s23, 2
      %p231 = por %p229, %p230
      %p233 = scmp.ne.s32.totalorder %s216, %s232
      %p234 = scmp.eq.s32.totalorder %s23, 0
      %p235 = por %p233, %p234
      %s236 = ssub.s32 %s24, %s36
      %p237 = scmp.eq.s32.totalorder %s236, 0
      %s239 = sadd.s32 %s238, 1
      %s240 = scalar_select %p237, %s238, %s239
      %p243 = pneg %p237
      %p244 = scmp.eq.s32.totalorder %s17, 2
      %p245 = por %p243, %p244
      %p246 = scmp.ne.s32.totalorder %s238, %s241
      %p247 = scmp.eq.s32.totalorder %s17, 0
      %p248 = por %p246, %p247
      %p249 = scmp.ne.s32.totalorder %s238, %s241
      %p250 = scmp.eq.s32.totalorder %s22, 2
      %p251 = por %p249, %p250
      %p252 = scmp.ne.s32.totalorder %s241, %s242
      %p253 = scmp.eq.s32.totalorder %s22, 0
      %p254 = por %p252, %p253
      %p255 = scmp.ne.s32.totalorder %s241, %s242
      %p256 = scmp.eq.s32.totalorder %s23, 2
      %p257 = por %p255, %p256
      %p259 = scmp.ne.s32.totalorder %s242, %s258
      %p260 = scmp.eq.s32.totalorder %s23, 0
      %p261 = por %p259, %p260
      %p262 = scmp.le.s32.totalorder 1, %s17
      %p263 = scmp.lt.s32.totalorder %s17, 4
      %p264 = pnand %p262, %p263
      %p265 = pneg %p264
      // Predicated region
      $region9: #{net_forward.1} parent=5 // pred_check
        _
      $region10: #{net_forward.1} parent=5 // pred_check_branch
        %267 = sbr.rel (%p264) target = $region12
      $region11: #{net_forward.1} parent=5 // pred_region
        %s268 = ssub.s32 %s17, 1
        // Predicated region
        $region13: #{net_forward.1} parent=11 // pred_check
          %p269 = pneg %p50
        $region14: #{net_forward.1} parent=11 // pred_check_branch
          %271 = sbr.rel (%p269) target = $region16
        $region15: #{net_forward.1} parent=11 // pred_region
          %273 = vsyncadd [#allocation5], 0
          %s275 = sshll.u32 %s0, 4
          %s276 = int_to_ptr.vmem [resolvable:$true] %s275
          %278 = dma.vmem_to_smem %s276, 16, [#allocation4], [#allocation5]
        $region16: #{net_forward.1} parent=11 // pred_fallthru
          _
        // Predicated region
        $region17: #{net_forward.1} parent=11 // pred_check
          %p279 = pneg %p71
        $region18: #{net_forward.1} parent=11 // pred_check_branch
          %281 = sbr.rel (%p279) target = $region20
        $region19: #{net_forward.1} parent=11 // pred_region
          _
        $region20: #{net_forward.1} parent=11 // pred_fallthru
          _
        // Predicated region
        $region21: #{net_forward.1} parent=11 // pred_check
          %p282 = pneg %p92
        $region22: #{net_forward.1} parent=11 // pred_check_branch
          %284 = sbr.rel (%p282) target = $region24
        $region23: #{net_forward.1} parent=11 // pred_region
          _
        $region24: #{net_forward.1} parent=11 // pred_fallthru
          _
        // Predicated region
        $region25: #{net_forward.1} parent=11 // pred_check
          %p285 = pneg %p113
        $region26: #{net_forward.1} parent=11 // pred_check_branch
          %287 = sbr.rel (%p285) target = $region28
        $region27: #{net_forward.1} parent=11 // pred_region
          _
        $region28: #{net_forward.1} parent=11 // pred_fallthru
          _
        // Predicated region
        $region29: #{net_forward.1} parent=11 // pred_check
          %p288 = pneg %p134
        $region30: #{net_forward.1} parent=11 // pred_check_branch
          %290 = sbr.rel (%p288) target = $region32
        $region31: #{net_forward.1} parent=11 // pred_region
          _
        $region32: #{net_forward.1} parent=11 // pred_fallthru
          _
        // Predicated region
        $region33: #{net_forward.1} parent=11 // pred_check
          %p291 = pneg %p155
        $region34: #{net_forward.1} parent=11 // pred_check_branch
          %293 = sbr.rel (%p291) target = $region36
        $region35: #{net_forward.1} parent=11 // pred_region
          _
        $region36: #{net_forward.1} parent=11 // pred_fallthru
          _
        // Predicated region
        $region37: #{net_forward.1} parent=11 // pred_check
          %p294 = pneg %p176
        $region38: #{net_forward.1} parent=11 // pred_check_branch
          %296 = sbr.rel (%p294) target = $region40
        $region39: #{net_forward.1} parent=11 // pred_region
          _
        $region40: #{net_forward.1} parent=11 // pred_fallthru
          _
        // Predicated region
        $region41: #{net_forward.1} parent=11 // pred_check
          %p297 = pneg %p202
        $region42: #{net_forward.1} parent=11 // pred_check_branch
          %299 = sbr.rel (%p297) target = $region44
        $region43: #{net_forward.1} parent=11 // pred_region
          %p300 = scmp.lt.s32.totalorder %s26, 0
          %s301 = scalar_select %p300, %s26, 0
          %s302 = smul.addr %s301, 8
          %s303 = scalar_lea.vmem %s7, %s302
        $region44: #{net_forward.1} parent=11 // pred_fallthru
          _
        // Predicated region
        $region45: #{net_forward.1} parent=11 // pred_check
          %p304 = pneg %p228
        $region46: #{net_forward.1} parent=11 // pred_check_branch
          %306 = sbr.rel (%p304) target = $region48
        $region47: #{net_forward.1} parent=11 // pred_region
          %p307 = scmp.lt.s32.totalorder %s26, 0
          %s308 = scalar_select %p307, %s26, 0
          %s309 = smul.addr %s308, 8
          %s310 = scalar_lea.vmem %s8, %s309
        $region48: #{net_forward.1} parent=11 // pred_fallthru
          _
      $region12: #{net_forward.1} parent=5 // pred_fallthru
        _
      %p311 = scmp.lt.s32.totalorder %s17, 3
      // Predicated region
      $region49: #{net_forward.1} parent=5 // pred_check
        %p312 = pneg %p311
      $region50: #{net_forward.1} parent=5 // pred_check_branch
        %314 = sbr.rel (%p312) target = $region52
      $region51: #{net_forward.1} parent=5 // pred_region
        _
      $region52: #{net_forward.1} parent=5 // pred_fallthru
        _
      %p315 = scmp.le.s32.totalorder 1, %s17
      %p316 = scmp.lt.s32.totalorder %s17, 4
      %p317 = pnand %p315, %p316
      %p318 = pneg %p317
      // Predicated region
      $region53: #{net_forward.1} parent=5 // pred_check
        _
      $region54: #{net_forward.1} parent=5 // pred_check_branch
        %320 = sbr.rel (%p317) target = $region56
      $region55: #{net_forward.1} parent=5 // pred_region
        %s321 = ssub.s32 %s17, 1
        // Predicated region
        $region57: #{net_forward.1} parent=55 // pred_check
          %p322 = pneg %p50
        $region58: #{net_forward.1} parent=55 // pred_check_branch
          %324 = sbr.rel (%p322) target = $region60
        $region59: #{net_forward.1} parent=55 // pred_region
          %326 = dma.done [#allocation5], 16
        $region60: #{net_forward.1} parent=55 // pred_fallthru
          _
        %327 = sfence
        %p328 = pneg %p50
        %p329 = pneg %p47
        %p330 = pneg %p71
        %p331 = pneg %p68
        %p332 = pneg %p92
        %p333 = pneg %p89
        %p334 = pneg %p113
        %p335 = pneg %p110
        %p336 = pneg %p134
        %p337 = pneg %p131
        %p338 = pneg %p155
        %p339 = pneg %p152
        %p340 = pneg %p176
        %p341 = pneg %p173
        %p342 = scmp.lt.s32.totalorder %s26, 0
        %s343 = scalar_select %p342, %s26, 0
        %s344 = smul.addr %s343, 8
        %s345 = scalar_lea.vmem %s7, %s344
        %p346 = pneg %p202
        %p347 = pneg %p199
        %p348 = scmp.lt.s32.totalorder %s26, 0
        %s349 = scalar_select %p348, %s26, 0
        %s350 = smul.addr %s349, 8
        %s351 = scalar_lea.vmem %s8, %s350
        %p352 = pneg %p228
        %p353 = pneg %p225
        %p354 = pneg %p254
        %p355 = pneg %p251
        %p356 = scmp.lt.s32.totalorder %s26, 0
        %s357 = scalar_select %p356, %s26, 0
        %s358 = smul.addr %s357, 4
        %s359 = scalar_lea.vmem %s9, %s358
        %p360 = scmp.lt.s32.totalorder %s26, 0
        %s361 = scalar_select %p360, %s26, 0
        %s362 = smul.addr %s361, 8
        %s363 = scalar_lea.vmem %s7, %s362
        %p364 = scmp.lt.s32.totalorder %s26, 0
        %s365 = scalar_select %p364, %s26, 0
        %s366 = smul.addr %s365, 8
        %s367 = scalar_lea.vmem %s8, %s366
        %p368 = scmp.lt.s32.totalorder %s26, 0
        %s369 = scalar_select %p368, %s26, 0
        %s370 = smul.addr %s369, 4
        %s371 = scalar_lea.vmem %s9, %s370
        %v372 = vld [vmem:[%s363] sm:$0xff]
        %v373 = vld [vmem:[%s367] sm:$0xff]
        %p374 = scmp.eq.s32.totalorder %s27, 0
        // Predicated region
        $region61: #{net_forward.1} parent=55 // pred_check
          %p375 = pneg %p374
        $region62: #{net_forward.1} parent=55 // pred_check_branch
          %377 = sbr.rel (%p375) target = $region64
        $region63: #{net_forward.1} parent=55 // pred_region
          %v378 = vld [vmem:[%s6] sm:$0xff]
          %380 = vset.pattern.permute.xlu0 0
          %381 = vperm.xlu0 %380, %v378
          %v382 = vpop.permute.xlu0 %381
          %v384 = vmul.f32 %v382, %v372
          %385 = vst [vmem:[#allocation2] sm:$0xff] %v384
        $region64: #{net_forward.1} parent=55 // pred_fallthru
          _
        %v386 = vld [vmem:[#allocation2] sm:$0xff]
        %s387 = smul.u32 %s27, 8
        %s388 = scalar_lea.vmem %s2, %s387
        %v389 = vld [vmem:[%s388] sm:$0xff]
        %s390 = scalar_lea.vmem %s3, %s387
        %v391 = vld [vmem:[%s390] sm:$0xff]
        %s392 = scalar_lea.vmem %s4, %s387
        %v393 = vld [vmem:[%s392] sm:$0xff]
        %s394 = scalar_lea.vmem %s5, %s387
        %v395 = vld [vmem:[%s394] sm:$0xff]
        %397 = vset.pattern.permute.xlu0 0
        %398 = vperm.xlu0 %397, %v395
        %v399 = vpop.permute.xlu0 %398
        %vm401 = vcmask 64512
        %v403 = vsel %vm401, %v389, 0
        %405 = vmatpush.msra.mxu0 0.0
        %406 = vmatpush.msra.mxu0 0.0
        %407 = vmatpush.msra.mxu0 0.0
        %408 = vmatpush.msra.mxu0 0.0
        %409 = vmatpush.msra.mxu0 0.0
        %410 = vmatpush.msra.mxu0 0.0
        %411 = vmatpush.msra.mxu0 0.0
        %412 = vmatpush.msra.mxu0 0.0
        %413 = vmatpush.msra.mxu0 0.0
        %414 = vmatpush.msra.mxu0 0.0
        %415 = vmatpush.msra.mxu0 0.0
        %416 = vmatpush.msra.mxu0 0.0
        %417 = vmatpush.msra.mxu0 0.0
        %418 = vmatpush.msra.mxu0 0.0
        %419 = vmatpush.msra.mxu0 0.0
        %v420 = vand.u32 %v386, 4294901760
        %421 = vmatpush.msra.mxu0 %v420
        %v422 = vand.u32 %v403, 4294901760
        %v423 = vsub.f32 %v403, %v422
        %v424 = vand.u32 %v423, 4294901760
        %v425 = vsub.f32 %v423, %v424
        %v426 = vand.u32 %v425, 4294901760
        %427 = vmatmul.f32.gmra.mxu0 %v426
        %v428 = vpop.f32.mrf.mxu0
        %v429 = vadd.f32 %v399, %v428
        %430 = vdwg.mxu0
        %431 = vmatpush.msra.mxu0 0.0
        %432 = vmatpush.msra.mxu0 0.0
        %433 = vmatpush.msra.mxu0 0.0
        %434 = vmatpush.msra.mxu0 0.0
        %435 = vmatpush.msra.mxu0 0.0
        %436 = vmatpush.msra.mxu0 0.0
        %437 = vmatpush.msra.mxu0 0.0
        %438 = vmatpush.msra.mxu0 0.0
        %439 = vmatpush.msra.mxu0 0.0
        %440 = vmatpush.msra.mxu0 0.0
        %441 = vmatpush.msra.mxu0 0.0
        %442 = vmatpush.msra.mxu0 0.0
        %443 = vmatpush.msra.mxu0 0.0
        %444 = vmatpush.msra.mxu0 0.0
        %445 = vmatpush.msra.mxu0 0.0
        %v446 = vand.u32 %v386, 4294901760
        %v447 = vsub.f32 %v386, %v446
        %v448 = vand.u32 %v447, 4294901760
        %v449 = vsub.f32 %v447, %v448
        %v450 = vand.u32 %v449, 4294901760
        %451 = vmatpush.msra.mxu0 %v450
        %v452 = vand.u32 %v403, 4294901760
        %453 = vmatmul.f32.gmra.mxu0 %v452
        %v454 = vpop.f32.mrf.mxu0
        %v455 = vadd.f32 %v429, %v454
        %456 = vdwg.mxu0
        %457 = vmatpush.msra.mxu0 0.0
        %458 = vmatpush.msra.mxu0 0.0
        %459 = vmatpush.msra.mxu0 0.0
        %460 = vmatpush.msra.mxu0 0.0
        %461 = vmatpush.msra.mxu0 0.0
        %462 = vmatpush.msra.mxu0 0.0
        %463 = vmatpush.msra.mxu0 0.0
        %464 = vmatpush.msra.mxu0 0.0
        %465 = vmatpush.msra.mxu0 0.0
        %466 = vmatpush.msra.mxu0 0.0
        %467 = vmatpush.msra.mxu0 0.0
        %468 = vmatpush.msra.mxu0 0.0
        %469 = vmatpush.msra.mxu0 0.0
        %470 = vmatpush.msra.mxu0 0.0
        %471 = vmatpush.msra.mxu0 0.0
        %v472 = vand.u32 %v386, 4294901760
        %v473 = vsub.f32 %v386, %v472
        %474 = vmatpush.msra.mxu0 %v473
        %v475 = vand.u32 %v403, 4294901760
        %v476 = vsub.f32 %v403, %v475
        %477 = vmatmul.f32.gmra.mxu0 %v476
        %v478 = vpop.f32.mrf.mxu0
        %v479 = vadd.f32 %v455, %v478
        %480 = vdwg.mxu0
        %481 = vmatpush.msra.mxu0 0.0
        %482 = vmatpush.msra.mxu0 0.0
        %483 = vmatpush.msra.mxu0 0.0
        %484 = vmatpush.msra.mxu0 0.0
        %485 = vmatpush.msra.mxu0 0.0
        %486 = vmatpush.msra.mxu0 0.0
        %487 = vmatpush.msra.mxu0 0.0
        %488 = vmatpush.msra.mxu0 0.0
        %489 = vmatpush.msra.mxu0 0.0
        %490 = vmatpush.msra.mxu0 0.0
        %491 = vmatpush.msra.mxu0 0.0
        %492 = vmatpush.msra.mxu0 0.0
        %493 = vmatpush.msra.mxu0 0.0
        %494 = vmatpush.msra.mxu0 0.0
        %495 = vmatpush.msra.mxu0 0.0
        %v496 = vand.u32 %v386, 4294901760
        %497 = vmatpush.msra.mxu0 %v496
        %v498 = vand.u32 %v403, 4294901760
        %v499 = vsub.f32 %v403, %v498
        %v500 = vand.u32 %v499, 4294901760
        %501 = vmatmul.f32.gmra.mxu0 %v500
        %v502 = vpop.f32.mrf.mxu0
        %v503 = vadd.f32 %v479, %v502
        %504 = vdwg.mxu0
        %505 = vmatpush.msra.mxu0 0.0
        %506 = vmatpush.msra.mxu0 0.0
        %507 = vmatpush.msra.mxu0 0.0
        %508 = vmatpush.msra.mxu0 0.0
        %509 = vmatpush.msra.mxu0 0.0
        %510 = vmatpush.msra.mxu0 0.0
        %511 = vmatpush.msra.mxu0 0.0
        %512 = vmatpush.msra.mxu0 0.0
        %513 = vmatpush.msra.mxu0 0.0
        %514 = vmatpush.msra.mxu0 0.0
        %515 = vmatpush.msra.mxu0 0.0
        %516 = vmatpush.msra.mxu0 0.0
        %517 = vmatpush.msra.mxu0 0.0
        %518 = vmatpush.msra.mxu0 0.0
        %519 = vmatpush.msra.mxu0 0.0
        %v520 = vand.u32 %v386, 4294901760
        %v521 = vsub.f32 %v386, %v520
        %v522 = vand.u32 %v521, 4294901760
        %523 = vmatpush.msra.mxu0 %v522
        %v524 = vand.u32 %v403, 4294901760
        %525 = vmatmul.f32.gmra.mxu0 %v524
        %v526 = vpop.f32.mrf.mxu0
        %v527 = vadd.f32 %v503, %v526
        %528 = vdwg.mxu0
        %529 = vmatpush.msra.mxu0 0.0
        %530 = vmatpush.msra.mxu0 0.0
        %531 = vmatpush.msra.mxu0 0.0
        %532 = vmatpush.msra.mxu0 0.0
        %533 = vmatpush.msra.mxu0 0.0
        %534 = vmatpush.msra.mxu0 0.0
        %535 = vmatpush.msra.mxu0 0.0
        %536 = vmatpush.msra.mxu0 0.0
        %537 = vmatpush.msra.mxu0 0.0
        %538 = vmatpush.msra.mxu0 0.0
        %539 = vmatpush.msra.mxu0 0.0
        %540 = vmatpush.msra.mxu0 0.0
        %541 = vmatpush.msra.mxu0 0.0
        %542 = vmatpush.msra.mxu0 0.0
        %543 = vmatpush.msra.mxu0 0.0
        %v544 = vand.u32 %v386, 4294901760
        %545 = vmatpush.msra.mxu0 %v544
        %v546 = vand.u32 %v403, 4294901760
        %547 = vmatmul.f32.gmra.mxu0 %v546
        %v548 = vpop.f32.mrf.mxu0
        %v549 = vadd.f32 %v527, %v548
        %550 = vdwg.mxu0
        %v551 = vxor.u32 %v549, 2147483648
        %v552 = vmul.f32 %v551, 1.442695
        %v553 = vpow.pop %v552
        %v554 = vadd.f32 %v553, 1.0
        %v555 = vrcp.pop %v554
        %v556 = vmul.f32 %v554, %v555
        %v557 = vsub.f32 1.0, %v556
        %v558 = vmul.f32 %v555, %v557
        %v559 = vadd.f32 %v555, %v558
        %vm560 = vweird.f32 %v554
        %vm561 = vweird.f32 %v555
        %vm562 = vmor %vm560, %vm561
        %v563 = vsel %vm562, %v555, %v559
        %v564 = vand.u32 2147483647, %v554
        %vm565 = vcmp.eq.f32.partialorder %v564, 8.507059e+37
        %v566 = vand.u32 %v554, 2147483648
        %v567 = vor.u32 1.1754944e-38, %v566
        %v568 = vsel %vm565, %v567, %v563
        %v569 = vmul.f32 1.0, %v568
        %v570 = vmul.f32 %v549, %v569
        %571 = vset.pattern.permute.xlu0 2
        %572 = vperm.xlu0 %571, %v395
        %v573 = vpop.permute.xlu0 %572
        %v576 = vsel %vm401, %v391, 0
        %578 = vmatpush.msra.mxu0 0.0
        %579 = vmatpush.msra.mxu0 0.0
        %580 = vmatpush.msra.mxu0 0.0
        %581 = vmatpush.msra.mxu0 0.0
        %582 = vmatpush.msra.mxu0 0.0
        %583 = vmatpush.msra.mxu0 0.0
        %584 = vmatpush.msra.mxu0 0.0
        %585 = vmatpush.msra.mxu0 0.0
        %586 = vmatpush.msra.mxu0 0.0
        %587 = vmatpush.msra.mxu0 0.0
        %588 = vmatpush.msra.mxu0 0.0
        %589 = vmatpush.msra.mxu0 0.0
        %590 = vmatpush.msra.mxu0 0.0
        %591 = vmatpush.msra.mxu0 0.0
        %592 = vmatpush.msra.mxu0 0.0
        %v593 = vand.u32 %v570, 4294901760
        %594 = vmatpush.msra.mxu0 %v593
        %v595 = vand.u32 %v576, 4294901760
        %v596 = vsub.f32 %v576, %v595
        %v597 = vand.u32 %v596, 4294901760
        %v598 = vsub.f32 %v596, %v597
        %v599 = vand.u32 %v598, 4294901760
        %600 = vmatmul.f32.gmra.mxu0 %v599
        %v601 = vpop.f32.mrf.mxu0
        %v602 = vadd.f32 %v573, %v601
        %603 = vdwg.mxu0
        %604 = vmatpush.msra.mxu0 0.0
        %605 = vmatpush.msra.mxu0 0.0
        %606 = vmatpush.msra.mxu0 0.0
        %607 = vmatpush.msra.mxu0 0.0
        %608 = vmatpush.msra.mxu0 0.0
        %609 = vmatpush.msra.mxu0 0.0
        %610 = vmatpush.msra.mxu0 0.0
        %611 = vmatpush.msra.mxu0 0.0
        %612 = vmatpush.msra.mxu0 0.0
        %613 = vmatpush.msra.mxu0 0.0
        %614 = vmatpush.msra.mxu0 0.0
        %615 = vmatpush.msra.mxu0 0.0
        %616 = vmatpush.msra.mxu0 0.0
        %617 = vmatpush.msra.mxu0 0.0
        %618 = vmatpush.msra.mxu0 0.0
        %v619 = vand.u32 %v570, 4294901760
        %v620 = vsub.f32 %v570, %v619
        %v621 = vand.u32 %v620, 4294901760
        %v622 = vsub.f32 %v620, %v621
        %v623 = vand.u32 %v622, 4294901760
        %624 = vmatpush.msra.mxu0 %v623
        %v625 = vand.u32 %v576, 4294901760
        %626 = vmatmul.f32.gmra.mxu0 %v625
        %v627 = vpop.f32.mrf.mxu0
        %v628 = vadd.f32 %v602, %v627
        %629 = vdwg.mxu0
        %630 = vmatpush.msra.mxu0 0.0
        %631 = vmatpush.msra.mxu0 0.0
        %632 = vmatpush.msra.mxu0 0.0
        %633 = vmatpush.msra.mxu0 0.0
        %634 = vmatpush.msra.mxu0 0.0
        %635 = vmatpush.msra.mxu0 0.0
        %636 = vmatpush.msra.mxu0 0.0
        %637 = vmatpush.msra.mxu0 0.0
        %638 = vmatpush.msra.mxu0 0.0
        %639 = vmatpush.msra.mxu0 0.0
        %640 = vmatpush.msra.mxu0 0.0
        %641 = vmatpush.msra.mxu0 0.0
        %642 = vmatpush.msra.mxu0 0.0
        %643 = vmatpush.msra.mxu0 0.0
        %644 = vmatpush.msra.mxu0 0.0
        %v645 = vand.u32 %v570, 4294901760
        %v646 = vsub.f32 %v570, %v645
        %647 = vmatpush.msra.mxu0 %v646
        %v648 = vand.u32 %v576, 4294901760
        %v649 = vsub.f32 %v576, %v648
        %650 = vmatmul.f32.gmra.mxu0 %v649
        %v651 = vpop.f32.mrf.mxu0
        %v652 = vadd.f32 %v628, %v651
        %653 = vdwg.mxu0
        %654 = vmatpush.msra.mxu0 0.0
        %655 = vmatpush.msra.mxu0 0.0
        %656 = vmatpush.msra.mxu0 0.0
        %657 = vmatpush.msra.mxu0 0.0
        %658 = vmatpush.msra.mxu0 0.0
        %659 = vmatpush.msra.mxu0 0.0
        %660 = vmatpush.msra.mxu0 0.0
        %661 = vmatpush.msra.mxu0 0.0
        %662 = vmatpush.msra.mxu0 0.0
        %663 = vmatpush.msra.mxu0 0.0
        %664 = vmatpush.msra.mxu0 0.0
        %665 = vmatpush.msra.mxu0 0.0
        %666 = vmatpush.msra.mxu0 0.0
        %667 = vmatpush.msra.mxu0 0.0
        %668 = vmatpush.msra.mxu0 0.0
        %v669 = vand.u32 %v570, 4294901760
        %670 = vmatpush.msra.mxu0 %v669
        %v671 = vand.u32 %v576, 4294901760
        %v672 = vsub.f32 %v576, %v671
        %v673 = vand.u32 %v672, 4294901760
        %674 = vmatmul.f32.gmra.mxu0 %v673
        %v675 = vpop.f32.mrf.mxu0
        %v676 = vadd.f32 %v652, %v675
        %677 = vdwg.mxu0
        %678 = vmatpush.msra.mxu0 0.0
        %679 = vmatpush.msra.mxu0 0.0
        %680 = vmatpush.msra.mxu0 0.0
        %681 = vmatpush.msra.mxu0 0.0
        %682 = vmatpush.msra.mxu0 0.0
        %683 = vmatpush.msra.mxu0 0.0
        %684 = vmatpush.msra.mxu0 0.0
        %685 = vmatpush.msra.mxu0 0.0
        %686 = vmatpush.msra.mxu0 0.0
        %687 = vmatpush.msra.mxu0 0.0
        %688 = vmatpush.msra.mxu0 0.0
        %689 = vmatpush.msra.mxu0 0.0
        %690 = vmatpush.msra.mxu0 0.0
        %691 = vmatpush.msra.mxu0 0.0
        %692 = vmatpush.msra.mxu0 0.0
        %v693 = vand.u32 %v570, 4294901760
        %v694 = vsub.f32 %v570, %v693
        %v695 = vand.u32 %v694, 4294901760
        %696 = vmatpush.msra.mxu0 %v695
        %v697 = vand.u32 %v576, 4294901760
        %698 = vmatmul.f32.gmra.mxu0 %v697
        %v699 = vpop.f32.mrf.mxu0
        %v700 = vadd.f32 %v676, %v699
        %701 = vdwg.mxu0
        %702 = vmatpush.msra.mxu0 0.0
        %703 = vmatpush.msra.mxu0 0.0
        %704 = vmatpush.msra.mxu0 0.0
        %705 = vmatpush.msra.mxu0 0.0
        %706 = vmatpush.msra.mxu0 0.0
        %707 = vmatpush.msra.mxu0 0.0
        %708 = vmatpush.msra.mxu0 0.0
        %709 = vmatpush.msra.mxu0 0.0
        %710 = vmatpush.msra.mxu0 0.0
        %711 = vmatpush.msra.mxu0 0.0
        %712 = vmatpush.msra.mxu0 0.0
        %713 = vmatpush.msra.mxu0 0.0
        %714 = vmatpush.msra.mxu0 0.0
        %715 = vmatpush.msra.mxu0 0.0
        %716 = vmatpush.msra.mxu0 0.0
        %v717 = vand.u32 %v570, 4294901760
        %718 = vmatpush.msra.mxu0 %v717
        %v719 = vand.u32 %v576, 4294901760
        %720 = vmatmul.f32.gmra.mxu0 %v719
        %v721 = vpop.f32.mrf.mxu0
        %v722 = vadd.f32 %v700, %v721
        %723 = vdwg.mxu0
        %724 = vset.pattern.permute.xlu0 4
        %725 = vperm.xlu0 %724, %v395
        %v726 = vpop.permute.xlu0 %725
        %v728 = vmul.f32 %v726, %v373
        %729 = vset.pattern.permute.xlu0 3
        %730 = vperm.xlu0 %729, %v395
        %v731 = vpop.permute.xlu0 %730
        %v733 = vsub.f32 %v731, %v728
        %v734 = vmul.f32 %v733, %v722
        %v735 = vadd.f32 %v570, %v734
        %736 = vset.pattern.permute.xlu0 5
        %737 = vperm.xlu0 %736, %v395
        %v738 = vpop.permute.xlu0 %737
        %v740 = vmul.f32 %v738, %v372
        %v741 = vadd.f32 %v735, %v740
        %742 = vset.pattern.permute.xlu0 6
        %743 = vperm.xlu0 %742, %v395
        %v744 = vpop.permute.xlu0 %743
        %v746 = vadd.f32 %v741, %v744
        %747 = vset.pattern.permute.xlu0 1
        %748 = vperm.xlu0 %747, %v395
        %v749 = vpop.permute.xlu0 %748
        %v752 = vsel %vm401, %v393, 0
        %754 = vmatpush.msra.mxu0 0.0
        %755 = vmatpush.msra.mxu0 0.0
        %756 = vmatpush.msra.mxu0 0.0
        %757 = vmatpush.msra.mxu0 0.0
        %758 = vmatpush.msra.mxu0 0.0
        %759 = vmatpush.msra.mxu0 0.0
        %760 = vmatpush.msra.mxu0 0.0
        %761 = vmatpush.msra.mxu0 0.0
        %762 = vmatpush.msra.mxu0 0.0
        %763 = vmatpush.msra.mxu0 0.0
        %764 = vmatpush.msra.mxu0 0.0
        %765 = vmatpush.msra.mxu0 0.0
        %766 = vmatpush.msra.mxu0 0.0
        %767 = vmatpush.msra.mxu0 0.0
        %768 = vmatpush.msra.mxu0 0.0
        %v769 = vand.u32 %v746, 4294901760
        %770 = vmatpush.msra.mxu0 %v769
        %v771 = vand.u32 %v752, 4294901760
        %v772 = vsub.f32 %v752, %v771
        %v773 = vand.u32 %v772, 4294901760
        %v774 = vsub.f32 %v772, %v773
        %v775 = vand.u32 %v774, 4294901760
        %776 = vmatmul.f32.gmra.mxu0 %v775
        %v777 = vpop.f32.mrf.mxu0
        %v778 = vadd.f32 %v749, %v777
        %779 = vdwg.mxu0
        %780 = vmatpush.msra.mxu0 0.0
        %781 = vmatpush.msra.mxu0 0.0
        %782 = vmatpush.msra.mxu0 0.0
        %783 = vmatpush.msra.mxu0 0.0
        %784 = vmatpush.msra.mxu0 0.0
        %785 = vmatpush.msra.mxu0 0.0
        %786 = vmatpush.msra.mxu0 0.0
        %787 = vmatpush.msra.mxu0 0.0
        %788 = vmatpush.msra.mxu0 0.0
        %789 = vmatpush.msra.mxu0 0.0
        %790 = vmatpush.msra.mxu0 0.0
        %791 = vmatpush.msra.mxu0 0.0
        %792 = vmatpush.msra.mxu0 0.0
        %793 = vmatpush.msra.mxu0 0.0
        %794 = vmatpush.msra.mxu0 0.0
        %v795 = vand.u32 %v746, 4294901760
        %v796 = vsub.f32 %v746, %v795
        %v797 = vand.u32 %v796, 4294901760
        %v798 = vsub.f32 %v796, %v797
        %v799 = vand.u32 %v798, 4294901760
        %800 = vmatpush.msra.mxu0 %v799
        %v801 = vand.u32 %v752, 4294901760
        %802 = vmatmul.f32.gmra.mxu0 %v801
        %v803 = vpop.f32.mrf.mxu0
        %v804 = vadd.f32 %v778, %v803
        %805 = vdwg.mxu0
        %806 = vmatpush.msra.mxu0 0.0
        %807 = vmatpush.msra.mxu0 0.0
        %808 = vmatpush.msra.mxu0 0.0
        %809 = vmatpush.msra.mxu0 0.0
        %810 = vmatpush.msra.mxu0 0.0
        %811 = vmatpush.msra.mxu0 0.0
        %812 = vmatpush.msra.mxu0 0.0
        %813 = vmatpush.msra.mxu0 0.0
        %814 = vmatpush.msra.mxu0 0.0
        %815 = vmatpush.msra.mxu0 0.0
        %816 = vmatpush.msra.mxu0 0.0
        %817 = vmatpush.msra.mxu0 0.0
        %818 = vmatpush.msra.mxu0 0.0
        %819 = vmatpush.msra.mxu0 0.0
        %820 = vmatpush.msra.mxu0 0.0
        %v821 = vand.u32 %v746, 4294901760
        %v822 = vsub.f32 %v746, %v821
        %823 = vmatpush.msra.mxu0 %v822
        %v824 = vand.u32 %v752, 4294901760
        %v825 = vsub.f32 %v752, %v824
        %826 = vmatmul.f32.gmra.mxu0 %v825
        %v827 = vpop.f32.mrf.mxu0
        %v828 = vadd.f32 %v804, %v827
        %829 = vdwg.mxu0
        %830 = vmatpush.msra.mxu0 0.0
        %831 = vmatpush.msra.mxu0 0.0
        %832 = vmatpush.msra.mxu0 0.0
        %833 = vmatpush.msra.mxu0 0.0
        %834 = vmatpush.msra.mxu0 0.0
        %835 = vmatpush.msra.mxu0 0.0
        %836 = vmatpush.msra.mxu0 0.0
        %837 = vmatpush.msra.mxu0 0.0
        %838 = vmatpush.msra.mxu0 0.0
        %839 = vmatpush.msra.mxu0 0.0
        %840 = vmatpush.msra.mxu0 0.0
        %841 = vmatpush.msra.mxu0 0.0
        %842 = vmatpush.msra.mxu0 0.0
        %843 = vmatpush.msra.mxu0 0.0
        %844 = vmatpush.msra.mxu0 0.0
        %v845 = vand.u32 %v746, 4294901760
        %846 = vmatpush.msra.mxu0 %v845
        %v847 = vand.u32 %v752, 4294901760
        %v848 = vsub.f32 %v752, %v847
        %v849 = vand.u32 %v848, 4294901760
        %850 = vmatmul.f32.gmra.mxu0 %v849
        %v851 = vpop.f32.mrf.mxu0
        %v852 = vadd.f32 %v828, %v851
        %853 = vdwg.mxu0
        %854 = vmatpush.msra.mxu0 0.0
        %855 = vmatpush.msra.mxu0 0.0
        %856 = vmatpush.msra.mxu0 0.0
        %857 = vmatpush.msra.mxu0 0.0
        %858 = vmatpush.msra.mxu0 0.0
        %859 = vmatpush.msra.mxu0 0.0
        %860 = vmatpush.msra.mxu0 0.0
        %861 = vmatpush.msra.mxu0 0.0
        %862 = vmatpush.msra.mxu0 0.0
        %863 = vmatpush.msra.mxu0 0.0
        %864 = vmatpush.msra.mxu0 0.0
        %865 = vmatpush.msra.mxu0 0.0
        %866 = vmatpush.msra.mxu0 0.0
        %867 = vmatpush.msra.mxu0 0.0
        %868 = vmatpush.msra.mxu0 0.0
        %v869 = vand.u32 %v746, 4294901760
        %v870 = vsub.f32 %v746, %v869
        %v871 = vand.u32 %v870, 4294901760
        %872 = vmatpush.msra.mxu0 %v871
        %v873 = vand.u32 %v752, 4294901760
        %874 = vmatmul.f32.gmra.mxu0 %v873
        %v875 = vpop.f32.mrf.mxu0
        %v876 = vadd.f32 %v852, %v875
        %877 = vdwg.mxu0
        %878 = vmatpush.msra.mxu0 0.0
        %879 = vmatpush.msra.mxu0 0.0
        %880 = vmatpush.msra.mxu0 0.0
        %881 = vmatpush.msra.mxu0 0.0
        %882 = vmatpush.msra.mxu0 0.0
        %883 = vmatpush.msra.mxu0 0.0
        %884 = vmatpush.msra.mxu0 0.0
        %885 = vmatpush.msra.mxu0 0.0
        %886 = vmatpush.msra.mxu0 0.0
        %887 = vmatpush.msra.mxu0 0.0
        %888 = vmatpush.msra.mxu0 0.0
        %889 = vmatpush.msra.mxu0 0.0
        %890 = vmatpush.msra.mxu0 0.0
        %891 = vmatpush.msra.mxu0 0.0
        %892 = vmatpush.msra.mxu0 0.0
        %v893 = vand.u32 %v746, 4294901760
        %894 = vmatpush.msra.mxu0 %v893
        %v895 = vand.u32 %v752, 4294901760
        %896 = vmatmul.f32.gmra.mxu0 %v895
        %v897 = vpop.f32.mrf.mxu0
        %v898 = vadd.f32 %v876, %v897
        %899 = vdwg.mxu0
        %s900 = smul.u32 %s27, 4
        %s901 = sld [smem:[#allocation4 + %s900]]
        %s902 = sadd.s32 %s900, 1
        %s903 = sld [smem:[#allocation4 + %s902]]
        %s904 = sadd.s32 %s900, 2
        %s905 = sld [smem:[#allocation4 + %s904]]
        %s906 = sadd.s32 %s900, 3
        %s907 = sld [smem:[#allocation4 + %s906]]
        %v908 = vstv %s903
        %v909 = vmul.f32 %v908, %v898
        %v910 = vsub.f32 %v386, %v909
        %v911 = vstv %s901
        %v912 = vmul.f32 %v910, %v911
        %v913 = vmul.f32 %v373, %v912
        %v914 = vadd.f32 %v913, %v372
        %v915 = vstv %s905
        %v916 = vmul.f32 %v915, %v914
        %v917 = vstv %s907
        %v918 = vmul.f32 %v917, %v898
        %v919 = vadd.f32 %v916, %v918
        %920 = vst [vmem:[#allocation2] sm:$0xff] %v919
        %p921 = scmp.eq.s32.totalorder %s27, 2
        // Predicated region
        $region65: #{net_forward.1} parent=55 // pred_check
          %p922 = pneg %p921
        $region66: #{net_forward.1} parent=55 // pred_check_branch
          %924 = sbr.rel (%p922) target = $region68
        $region67: #{net_forward.1} parent=55 // pred_region
          %s925 = sld [smem:[#allocation3]]
          %v926 = vstv %s925
          %v927 = vmul.f32 %v926, %v919
          %v929 = vrot.slane %v927, 4
          %v931 = vadd.f32 %v919, %v929
          %932 = vst [vmem:[%s371] sm:$0xf] %v931
        $region68: #{net_forward.1} parent=55 // pred_fallthru
          _
        %p933 = scmp.lt.s32.totalorder %s26, 0
        %s934 = scalar_select %p933, %s26, 0
        %s935 = smul.addr %s934, 4
        %s936 = scalar_lea.vmem %s9, %s935
        // Predicated region
        $region69: #{net_forward.1} parent=55 // pred_check
          %p937 = pneg %p251
        $region70: #{net_forward.1} parent=55 // pred_check_branch
          %939 = sbr.rel (%p937) target = $region72
        $region71: #{net_forward.1} parent=55 // pred_region
          _
        $region72: #{net_forward.1} parent=55 // pred_fallthru
          _
        // Predicated region
        $region73: #{net_forward.1} parent=55 // pred_check
          %p940 = pneg %p251
        $region74: #{net_forward.1} parent=55 // pred_check_branch
          %942 = sbr.rel (%p940) target = $region76
        $region75: #{net_forward.1} parent=55 // pred_region
          %p943 = scmp.lt.s32.totalorder %s26, 0
          %s944 = scalar_select %p943, %s26, 0
          %s945 = smul.addr %s944, 4
          %s946 = scalar_lea.vmem %s9, %s945
        $region76: #{net_forward.1} parent=55 // pred_fallthru
          _
      $region56: #{net_forward.1} parent=5 // pred_fallthru
        _
      %p947 = scmp.le.s32.totalorder 2, %s17
      // Predicated region
      $region77: #{net_forward.1} parent=5 // pred_check
        %p948 = pneg %p947
      $region78: #{net_forward.1} parent=5 // pred_check_branch
        %950 = sbr.rel (%p948) target = $region80
      $region79: #{net_forward.1} parent=5 // pred_region
        %s951 = ssub.s32 %s17, 2
      $region80: #{net_forward.1} parent=5 // pred_fallthru
        _
    $region6: #{net_forward.1} parent=1 // loop_footer
      %s21 = sadd.s32 1, %s17
    $region7: #{net_forward.1} parent=1 // loop_footer_branch
      %16 = sbr.rel target = $region3
    $region8: #{net_forward.1} parent=1 // loop_exit
      _
    %952 = vsyncpa [#allocation5], 1
    %s953 = scalar_lea.sflag [#allocation5], 1
    %954 = vsyncpa %s953, 1

</llo_original>
